<compile_context>
chip_gen: v6e
topology: v6e:2x2x1
jax: 0.10.0
libtpu: 0.0.40
codegen_flags: <defaults>
</compile_context>

<pallas_src>
import functools

import jax
import jax.numpy as jnp
import numpy as np
from jax.experimental import pallas as pl
from jax.experimental.pallas import tpu as pltpu


def _residual_block_kernel(*refs, k, pad, stride, tb, downsample, compute_dtype):
    """One grid step: `tb` batch elements, full channel & length extents (NCL layout)."""
    # Unpack refs -- the input count depends on the static config flags.
    x_ref, w1_ref, b1_ref, w2_ref, b2_ref = refs[:5]
    i = 5
    if downsample:
        ws_ref, bs_ref = refs[i], refs[i + 1]
        i += 2
    if stride > 1:
        sel_ref = refs[i]
        i += 1
    o_ref = refs[i]

    c_in = x_ref.shape[1]

    w1 = w1_ref[...]                      # (C_out, k*C_in)  bf16, BN1 scale folded in
    b1 = b1_ref[...]                      # (C_out, 1)       f32   BN1 shift
    w2 = w2_ref[...]                      # (C_out, k*C_out) bf16, BN2 scale folded in
    b2 = b2_ref[...]                      # (C_out, 1)       f32   BN2 shift
    if downsample:
        ws = ws_ref[...]                  # (C_out, C_in)    bf16, shortcut BN folded in
        bs = bs_ref[...]                  # (C_out, 1)       f32
    if stride > 1:
        sel = sel_ref[...]                # (L, L_out)       one-hot lane subsampler, bf16

    def mm(w, patch):
        # bf16 x bf16 MXU matmul, f32 accumulate.
        return jnp.dot(w, patch.astype(compute_dtype),
                       preferred_element_type=jnp.float32)

    def subsample(v):
        # Exact stride-s lane subsampling via a one-hot matmul; values pass through exactly,
        # so casting the f32 accumulator back to the operand dtype is lossless.
        return jnp.dot(v, sel, preferred_element_type=jnp.float32).astype(v.dtype)

    def pad_and_patch(v, taps):
        # v: (C, Lv) bf16  ->  stride-1 im2col patch (taps*C, Lv + 2*pad - taps + 1), bf16.
        c, lv = v.shape
        lw = lv + 2 * pad - taps + 1
        if pad > 0:
            z = jnp.zeros((c, pad), v.dtype)
            v = jnp.concatenate([z, v, z], axis=1)
        return jnp.concatenate([v[:, t:t + lw] for t in range(taps)], axis=0)

    for b in range(tb):                   # small, unrolled; all matmuls are 2-D
        x_b = x_ref[b]                              # (C_in, L) bf16

        # conv1 (+ folded BN1) + ReLU
        p1 = pad_and_patch(x_b, k)                  # (k*C_in, L) bf16
        if stride > 1:
            p1 = subsample(p1)                      # (k*C_in, L_out) bf16
        y1 = jnp.maximum(mm(w1, p1) + b1, 0.0)      # (C_out, L_out), f32

        # conv2 (+ folded BN2)
        p2 = pad_and_patch(y1.astype(compute_dtype), k)   # (k*C_out, L_out) bf16
        y2 = mm(w2, p2) + b2                        # (C_out, L_out), f32

        # shortcut
        if downsample:
            if stride > 1:
                # Middle tap of the strided patch is exactly x[:, ::stride]; reuse it and
                # skip a second selection matmul.
                xs = p1[pad * c_in:(pad + 1) * c_in, :]
            else:
                xs = x_b
            sc = mm(ws, xs) + bs                    # (C_out, L_out), f32
        else:
            sc = x_b.astype(jnp.float32)            # identity: C_in==C_out, L==L_out

        # residual add + ReLU, lane-dense store (last dim = L_out)
        o_ref[b] = jnp.maximum(y2 + sc, 0.0).astype(o_ref.dtype)


def _bn_scale_shift(bn_params, eps=1e-5):
    gamma, beta, running_mean, running_var = bn_params
    scale = gamma * jax.lax.rsqrt(running_var + eps)
    shift = beta - running_mean * scale
    return scale, shift


def fold_params(raw, *, kernel_size, compute_dtype=jnp.bfloat16):
    """One-time wrapper cost: fold inference-BN scale into conv weights and repack.

    Conv weights arrive in PyTorch layout (C_out, C_in, K) and are repacked to
    (C_out, K*C_in) with tap-major column ordering, matching the kernel's im2col patch.
    """
    k = kernel_size

    def pack(w_oik, scale):
        c_out, c_in, kk = w_oik.shape
        assert kk == k
        wf = w_oik * scale[:, None, None]
        return jnp.transpose(wf, (0, 2, 1)).reshape(c_out, kk * c_in).astype(compute_dtype)

    s1, b1 = _bn_scale_shift(raw["bn1"])
    s2, b2 = _bn_scale_shift(raw["bn2"])
    folded = {
        "w1": pack(raw["w1"], s1), "b1": b1[:, None].astype(jnp.float32),
        "w2": pack(raw["w2"], s2), "b2": b2[:, None].astype(jnp.float32),
    }
    if "ws" in raw:  # downsample shortcut: 1x1 conv + BN
        ss, bs = _bn_scale_shift(raw["bns"])
        folded["ws"] = (raw["ws"][:, :, 0] * ss[:, None]).astype(compute_dtype)
        folded["bs"] = bs[:, None].astype(jnp.float32)
    return folded


def residual_block_forward(x_ncl, folded, *, kernel_size=3, stride=1,
                           block_batch=None, compute_dtype=jnp.bfloat16):
    """x_ncl: (N, C_in, L) -> (N, C_out, L_out); PyTorch NCL layout end to end."""
    n, c_in, l = x_ncl.shape
    k = kernel_size
    assert k % 2 == 1, "ResidualBlock 'same' padding requires an odd kernel_size"
    pad = k // 2
    c_out = folded["w1"].shape[0]
    assert folded["w1"].shape[1] == k * c_in
    l_out = (l + 2 * pad - k) // stride + 1
    l1 = l + 2 * pad - k + 1              # stride-1 conv1 output length (== l for odd k)
    downsample = "ws" in folded

    if block_batch is None:
        # Largest batch block that still leaves >=2 parallel grid steps (megacore sharding).
        block_batch = 1
        for cand in (8, 4, 2):
            if n % cand == 0 and n // cand >= 2:
                block_batch = cand
                break
    tb = block_batch
    assert n % tb == 0

    x_c = x_ncl.astype(compute_dtype)     # bf16 operands: halves the kernel's HBM reads

    args = [x_c, folded["w1"], folded["b1"], folded["w2"], folded["b2"]]
    in_specs = [
        pl.BlockSpec((tb, c_in, l), lambda i: (i, 0, 0)),
        pl.BlockSpec((c_out, k * c_in), lambda i: (0, 0)),
        pl.BlockSpec((c_out, 1), lambda i: (0, 0)),
        pl.BlockSpec((c_out, k * c_out), lambda i: (0, 0)),
        pl.BlockSpec((c_out, 1), lambda i: (0, 0)),
    ]
    if downsample:
        args += [folded["ws"], folded["bs"]]
        in_specs += [pl.BlockSpec((c_out, c_in), lambda i: (0, 0)),
                     pl.BlockSpec((c_out, 1), lambda i: (0, 0))]
    if stride > 1:
        sel = (jnp.arange(l1)[:, None] == stride * jnp.arange(l_out)[None, :])
        args.append(sel.astype(compute_dtype))
        in_specs.append(pl.BlockSpec((l1, l_out), lambda i: (0, 0)))

    kern = functools.partial(_residual_block_kernel, k=k, pad=pad, stride=stride,
                             tb=tb, downsample=downsample, compute_dtype=compute_dtype)

    return pl.pallas_call(
        kern,
        out_shape=jax.ShapeDtypeStruct((n, c_out, l_out), jnp.float32),
        grid_spec=pltpu.PrefetchScalarGridSpec(
            num_scalar_prefetch=0,
            grid=(n // tb,),
            in_specs=in_specs,
            out_specs=pl.BlockSpec((tb, c_out, l_out), lambda i: (i, 0, 0)),
        ),
        compiler_params=pltpu.CompilerParams(
            dimension_semantics=("parallel",),
            # Tiny per-step blocks; 32 MiB is safely within physical VMEM on v5e/v6e/v7x.
            vmem_limit_bytes=32 * 1024 * 1024),
    )(*args)


def make_params(key, c_in, c_out, kernel_size, stride):
    """Deterministic synthetic parameters in PyTorch layout (Conv1d weight: (C_out, C_in, K))."""
    ks = jax.random.split(key, 6)

    def bn_stats(k_, c):
        k1, k2, k3, k4 = jax.random.split(k_, 4)
        gamma = 1.0 + 0.1 * jax.random.normal(k1, (c,), jnp.float32)
        beta = 0.1 * jax.random.normal(k2, (c,), jnp.float32)
        running_mean = 0.1 * jax.random.normal(k3, (c,), jnp.float32)
        running_var = 1.0 + 0.2 * jax.random.uniform(k4, (c,), jnp.float32)
        return gamma, beta, running_mean, running_var

    raw = {
        "w1": 0.3 * jax.random.normal(ks[0], (c_out, c_in, kernel_size), jnp.float32),
        "bn1": bn_stats(ks[1], c_out),
        "w2": 0.3 * jax.random.normal(ks[2], (c_out, c_out, kernel_size), jnp.float32),
        "bn2": bn_stats(ks[3], c_out),
    }
    if stride != 1 or c_in != c_out:
        raw["ws"] = 0.3 * jax.random.normal(ks[4], (c_out, c_in, 1), jnp.float32)
        raw["bns"] = bn_stats(ks[5], c_out)
    return raw


def ref_forward(x_ncl, folded, *, kernel_size, stride, compute_dtype=jnp.bfloat16):
    """Pure-JAX/XLA reference with the same numerics (bf16 operands, f32 accumulate)."""
    k = kernel_size
    pad = k // 2
    c_out = folded["w1"].shape[0]
    c_in = folded["w1"].shape[1] // k
    x = x_ncl.astype(compute_dtype)

    def conv(inp, w_oik, s, p):
        return jax.lax.conv_general_dilated(
            inp, w_oik, window_strides=(s,), padding=[(p, p)],
            dimension_numbers=("NCH", "OIH", "NCH"),
            preferred_element_type=jnp.float32)

    w1 = jnp.transpose(folded["w1"].reshape(c_out, k, c_in), (0, 2, 1))
    w2 = jnp.transpose(folded["w2"].reshape(c_out, k, c_out), (0, 2, 1))

    y1 = jnp.maximum(conv(x, w1, stride, pad) + folded["b1"][None], 0.0)
    y1 = y1.astype(compute_dtype)
    y2 = conv(y1, w2, 1, pad) + folded["b2"][None]
    if "ws" in folded:
        sc = conv(x, folded["ws"][:, :, None], stride, 0) + folded["bs"][None]
    else:
        sc = x.astype(jnp.float32)
    return jnp.maximum(y2 + sc, 0.0)


if __name__ == "__main__":
    key = jax.random.PRNGKey(0)

    configs = [
        # (name, N, C_in, C_out, L, K, stride)
        ("downsample", 4, 8, 16, 256, 3, 2),   # strided conv + 1x1-conv shortcut path
        ("identity",   4, 16, 16, 256, 3, 1),  # identity shortcut path
    ]
    for name, n, c_in, c_out, l, k, stride in configs:
        kx, kp, key = jax.random.split(key, 3)
        x = jax.random.normal(kx, (n, c_in, l), jnp.float32)
        raw = make_params(kp, c_in, c_out, k, stride)
        folded = fold_params(raw, kernel_size=k)

        out = residual_block_forward(x, folded, kernel_size=k, stride=stride)
        out = jax.block_until_ready(out)

        ref = ref_forward(x, folded, kernel_size=k, stride=stride)
        l_out = (l + 2 * (k // 2) - k) // stride + 1
        assert out.shape == (n, c_out, l_out), (name, out.shape)
        out_np, ref_np = np.asarray(out), np.asarray(ref)
        if not np.allclose(out_np, ref_np, atol=1e-2, rtol=1e-2):
            err = float(np.max(np.abs(out_np - ref_np)))
            raise SystemExit(f"{name}: mismatch, max abs err = {err}")

    print("KERNEL_OK")
</pallas_src>

<mosaic_0001>
module attributes {stable_mosaic.version = 11 : i64} {
  func.func @_residual_block_kernel(%arg0: i32, %arg1: memref<2x8x256xbf16, #tpu.memory_space<vmem>>, %arg2: memref<16x24xbf16, #tpu.memory_space<vmem>>, %arg3: memref<16x1xf32, #tpu.memory_space<vmem>>, %arg4: memref<16x48xbf16, #tpu.memory_space<vmem>>, %arg5: memref<16x1xf32, #tpu.memory_space<vmem>>, %arg6: memref<16x8xbf16, #tpu.memory_space<vmem>>, %arg7: memref<16x1xf32, #tpu.memory_space<vmem>>, %arg8: memref<256x128xbf16, #tpu.memory_space<vmem>>, %arg9: memref<2x16x128xf32, #tpu.memory_space<vmem>>) attributes {dimension_semantics = [#tpu.dimension_semantics<parallel>], iteration_bounds = array<i64: 2>, scalar_prefetch = 0 : i64, scratch_operands = 0 : i64, tpu.core_type = #tpu.core_type<tc>, window_params = [{transform_indices = @transform_0, window_bounds = array<i64: 2, 8, 256>}, {pipeline_mode = #tpu.pipeline_mode<synchronous>, transform_indices = @transform_1, window_bounds = array<i64: 16, 24>}, {pipeline_mode = #tpu.pipeline_mode<synchronous>, transform_indices = @transform_2, window_bounds = array<i64: 16, 1>}, {pipeline_mode = #tpu.pipeline_mode<synchronous>, transform_indices = @transform_3, window_bounds = array<i64: 16, 48>}, {pipeline_mode = #tpu.pipeline_mode<synchronous>, transform_indices = @transform_4, window_bounds = array<i64: 16, 1>}, {pipeline_mode = #tpu.pipeline_mode<synchronous>, transform_indices = @transform_5, window_bounds = array<i64: 16, 8>}, {pipeline_mode = #tpu.pipeline_mode<synchronous>, transform_indices = @transform_6, window_bounds = array<i64: 16, 1>}, {pipeline_mode = #tpu.pipeline_mode<synchronous>, transform_indices = @transform_7, window_bounds = array<i64: 256, 128>}, {transform_indices = @transform_8, window_bounds = array<i64: 2, 16, 128>}]} {
    %c0 = arith.constant 0 : index
    %c0_0 = arith.constant 0 : index
    %0 = vector.load %arg2[%c0, %c0_0] : memref<16x24xbf16, #tpu.memory_space<vmem>>, vector<16x24xbf16>
    %c0_1 = arith.constant 0 : index
    %c0_2 = arith.constant 0 : index
    %1 = vector.load %arg3[%c0_1, %c0_2] : memref<16x1xf32, #tpu.memory_space<vmem>>, vector<16x1xf32>
    %c0_3 = arith.constant 0 : index
    %c0_4 = arith.constant 0 : index
    %2 = vector.load %arg4[%c0_3, %c0_4] : memref<16x48xbf16, #tpu.memory_space<vmem>>, vector<16x48xbf16>
    %c0_5 = arith.constant 0 : index
    %c0_6 = arith.constant 0 : index
    %3 = vector.load %arg5[%c0_5, %c0_6] : memref<16x1xf32, #tpu.memory_space<vmem>>, vector<16x1xf32>
    %c0_7 = arith.constant 0 : index
    %c0_8 = arith.constant 0 : index
    %4 = vector.load %arg6[%c0_7, %c0_8] : memref<16x8xbf16, #tpu.memory_space<vmem>>, vector<16x8xbf16>
    %c0_9 = arith.constant 0 : index
    %c0_10 = arith.constant 0 : index
    %5 = vector.load %arg7[%c0_9, %c0_10] : memref<16x1xf32, #tpu.memory_space<vmem>>, vector<16x1xf32>
    %c0_11 = arith.constant 0 : index
    %c0_12 = arith.constant 0 : index
    %6 = vector.load %arg8[%c0_11, %c0_12] : memref<256x128xbf16, #tpu.memory_space<vmem>>, vector<256x128xbf16>
    %c0_13 = arith.constant 0 : index
    %c0_14 = arith.constant 0 : index
    %c0_15 = arith.constant 0 : index
    %7 = vector.load %arg1[%c0_13, %c0_14, %c0_15] : memref<2x8x256xbf16, #tpu.memory_space<vmem>>, vector<1x8x256xbf16>
    %8 = vector.shape_cast %7 : vector<1x8x256xbf16> to vector<8x256xbf16>
    %cst = arith.constant 0.000000e+00 : bf16
    %9 = vector.broadcast %cst : bf16 to vector<8x1xbf16>
    %10 = tpu.concatenate %9, %8, %9 in 1 : vector<8x1xbf16>, vector<8x256xbf16>, vector<8x1xbf16> -> vector<8x258xbf16>
    %11 = vector.extract_strided_slice %10 {offsets = [0, 0], sizes = [8, 256], strides = [1, 1]} : vector<8x258xbf16> to vector<8x256xbf16>
    %12 = vector.extract_strided_slice %10 {offsets = [0, 1], sizes = [8, 256], strides = [1, 1]} : vector<8x258xbf16> to vector<8x256xbf16>
    %13 = vector.extract_strided_slice %10 {offsets = [0, 2], sizes = [8, 256], strides = [1, 1]} : vector<8x258xbf16> to vector<8x256xbf16>
    %14 = tpu.concatenate %11, %12, %13 in 0 : vector<8x256xbf16>, vector<8x256xbf16>, vector<8x256xbf16> -> vector<24x256xbf16>
    %cst_16 = arith.constant dense<0.000000e+00> : vector<24x128xf32>
    %15 = tpu.matmul %14, %6, %cst_16 {dimension_numbers = #tpu.dot_dimension_numbers<[1], [0], [0], [1], [0, 0, 1, 1], [], []>} : vector<24x256xbf16>, vector<256x128xbf16>, vector<24x128xf32> -> vector<24x128xf32>
    %16 = arith.truncf %15 : vector<24x128xf32> to vector<24x128xbf16>
    %cst_17 = arith.constant dense<0.000000e+00> : vector<16x128xf32>
    %17 = tpu.matmul %0, %16, %cst_17 {dimension_numbers = #tpu.dot_dimension_numbers<[1], [0], [0], [1], [0, 0, 1, 1], [], []>} : vector<16x24xbf16>, vector<24x128xbf16>, vector<16x128xf32> -> vector<16x128xf32>
    %18 = vector.broadcast %1 : vector<16x1xf32> to vector<16x128xf32>
    %19 = arith.addf %17, %18 : vector<16x128xf32>
    %cst_18 = arith.constant 0.000000e+00 : f32
    %20 = vector.broadcast %cst_18 : f32 to vector<16x128xf32>
    %21 = arith.maximumf %19, %20 : vector<16x128xf32>
    %22 = arith.truncf %21 : vector<16x128xf32> to vector<16x128xbf16>
    %cst_19 = arith.constant 0.000000e+00 : bf16
    %23 = vector.broadcast %cst_19 : bf16 to vector<16x1xbf16>
    %24 = tpu.concatenate %23, %22, %23 in 1 : vector<16x1xbf16>, vector<16x128xbf16>, vector<16x1xbf16> -> vector<16x130xbf16>
    %25 = vector.extract_strided_slice %24 {offsets = [0, 0], sizes = [16, 128], strides = [1, 1]} : vector<16x130xbf16> to vector<16x128xbf16>
    %26 = vector.extract_strided_slice %24 {offsets = [0, 1], sizes = [16, 128], strides = [1, 1]} : vector<16x130xbf16> to vector<16x128xbf16>
    %27 = vector.extract_strided_slice %24 {offsets = [0, 2], sizes = [16, 128], strides = [1, 1]} : vector<16x130xbf16> to vector<16x128xbf16>
    %28 = tpu.concatenate %25, %26, %27 in 0 : vector<16x128xbf16>, vector<16x128xbf16>, vector<16x128xbf16> -> vector<48x128xbf16>
    %cst_20 = arith.constant dense<0.000000e+00> : vector<16x128xf32>
    %29 = tpu.matmul %2, %28, %cst_20 {dimension_numbers = #tpu.dot_dimension_numbers<[1], [0], [0], [1], [0, 0, 1, 1], [], []>} : vector<16x48xbf16>, vector<48x128xbf16>, vector<16x128xf32> -> vector<16x128xf32>
    %30 = vector.broadcast %3 : vector<16x1xf32> to vector<16x128xf32>
    %31 = arith.addf %29, %30 : vector<16x128xf32>
    %32 = vector.extract_strided_slice %16 {offsets = [8, 0], sizes = [8, 128], strides = [1, 1]} : vector<24x128xbf16> to vector<8x128xbf16>
    %cst_21 = arith.constant dense<0.000000e+00> : vector<16x128xf32>
    %33 = tpu.matmul %4, %32, %cst_21 {dimension_numbers = #tpu.dot_dimension_numbers<[1], [0], [0], [1], [0, 0, 1, 1], [], []>} : vector<16x8xbf16>, vector<8x128xbf16>, vector<16x128xf32> -> vector<16x128xf32>
    %34 = vector.broadcast %5 : vector<16x1xf32> to vector<16x128xf32>
    %35 = arith.addf %33, %34 : vector<16x128xf32>
    %36 = arith.addf %31, %35 : vector<16x128xf32>
    %cst_22 = arith.constant 0.000000e+00 : f32
    %37 = vector.broadcast %cst_22 : f32 to vector<16x128xf32>
    %38 = arith.maximumf %36, %37 : vector<16x128xf32>
    %c0_23 = arith.constant 0 : index
    %c0_24 = arith.constant 0 : index
    %c0_25 = arith.constant 0 : index
    %39 = vector.load %arg9[%c0_23, %c0_24, %c0_25] : memref<2x16x128xf32, #tpu.memory_space<vmem>>, vector<1x16x128xf32>
    %40 = vector.shape_cast %39 : vector<1x16x128xf32> to vector<16x128xf32>
    %41 = vector.shape_cast %38 : vector<16x128xf32> to vector<1x16x128xf32>
    tpu.vector_store %arg9[%c0_23, %c0_24, %c0_25], %41 {strides = array<i32>} : memref<2x16x128xf32, #tpu.memory_space<vmem>>, vector<1x16x128xf32>,
    %c1 = arith.constant 1 : index
    %c0_26 = arith.constant 0 : index
    %c0_27 = arith.constant 0 : index
    %42 = vector.load %arg1[%c1, %c0_26, %c0_27] : memref<2x8x256xbf16, #tpu.memory_space<vmem>>, vector<1x8x256xbf16>
    %43 = vector.shape_cast %42 : vector<1x8x256xbf16> to vector<8x256xbf16>
    %cst_28 = arith.constant 0.000000e+00 : bf16
    %44 = vector.broadcast %cst_28 : bf16 to vector<8x1xbf16>
    %45 = tpu.concatenate %44, %43, %44 in 1 : vector<8x1xbf16>, vector<8x256xbf16>, vector<8x1xbf16> -> vector<8x258xbf16>
    %46 = vector.extract_strided_slice %45 {offsets = [0, 0], sizes = [8, 256], strides = [1, 1]} : vector<8x258xbf16> to vector<8x256xbf16>
    %47 = vector.extract_strided_slice %45 {offsets = [0, 1], sizes = [8, 256], strides = [1, 1]} : vector<8x258xbf16> to vector<8x256xbf16>
    %48 = vector.extract_strided_slice %45 {offsets = [0, 2], sizes = [8, 256], strides = [1, 1]} : vector<8x258xbf16> to vector<8x256xbf16>
    %49 = tpu.concatenate %46, %47, %48 in 0 : vector<8x256xbf16>, vector<8x256xbf16>, vector<8x256xbf16> -> vector<24x256xbf16>
    %cst_29 = arith.constant dense<0.000000e+00> : vector<24x128xf32>
    %50 = tpu.matmul %49, %6, %cst_29 {dimension_numbers = #tpu.dot_dimension_numbers<[1], [0], [0], [1], [0, 0, 1, 1], [], []>} : vector<24x256xbf16>, vector<256x128xbf16>, vector<24x128xf32> -> vector<24x128xf32>
    %51 = arith.truncf %50 : vector<24x128xf32> to vector<24x128xbf16>
    %cst_30 = arith.constant dense<0.000000e+00> : vector<16x128xf32>
    %52 = tpu.matmul %0, %51, %cst_30 {dimension_numbers = #tpu.dot_dimension_numbers<[1], [0], [0], [1], [0, 0, 1, 1], [], []>} : vector<16x24xbf16>, vector<24x128xbf16>, vector<16x128xf32> -> vector<16x128xf32>
    %53 = vector.broadcast %1 : vector<16x1xf32> to vector<16x128xf32>
    %54 = arith.addf %52, %53 : vector<16x128xf32>
    %cst_31 = arith.constant 0.000000e+00 : f32
    %55 = vector.broadcast %cst_31 : f32 to vector<16x128xf32>
    %56 = arith.maximumf %54, %55 : vector<16x128xf32>
    %57 = arith.truncf %56 : vector<16x128xf32> to vector<16x128xbf16>
    %cst_32 = arith.constant 0.000000e+00 : bf16
    %58 = vector.broadcast %cst_32 : bf16 to vector<16x1xbf16>
    %59 = tpu.concatenate %58, %57, %58 in 1 : vector<16x1xbf16>, vector<16x128xbf16>, vector<16x1xbf16> -> vector<16x130xbf16>
    %60 = vector.extract_strided_slice %59 {offsets = [0, 0], sizes = [16, 128], strides = [1, 1]} : vector<16x130xbf16> to vector<16x128xbf16>
    %61 = vector.extract_strided_slice %59 {offsets = [0, 1], sizes = [16, 128], strides = [1, 1]} : vector<16x130xbf16> to vector<16x128xbf16>
    %62 = vector.extract_strided_slice %59 {offsets = [0, 2], sizes = [16, 128], strides = [1, 1]} : vector<16x130xbf16> to vector<16x128xbf16>
    %63 = tpu.concatenate %60, %61, %62 in 0 : vector<16x128xbf16>, vector<16x128xbf16>, vector<16x128xbf16> -> vector<48x128xbf16>
    %cst_33 = arith.constant dense<0.000000e+00> : vector<16x128xf32>
    %64 = tpu.matmul %2, %63, %cst_33 {dimension_numbers = #tpu.dot_dimension_numbers<[1], [0], [0], [1], [0, 0, 1, 1], [], []>} : vector<16x48xbf16>, vector<48x128xbf16>, vector<16x128xf32> -> vector<16x128xf32>
    %65 = vector.broadcast %3 : vector<16x1xf32> to vector<16x128xf32>
    %66 = arith.addf %64, %65 : vector<16x128xf32>
    %67 = vector.extract_strided_slice %51 {offsets = [8, 0], sizes = [8, 128], strides = [1, 1]} : vector<24x128xbf16> to vector<8x128xbf16>
    %cst_34 = arith.constant dense<0.000000e+00> : vector<16x128xf32>
    %68 = tpu.matmul %4, %67, %cst_34 {dimension_numbers = #tpu.dot_dimension_numbers<[1], [0], [0], [1], [0, 0, 1, 1], [], []>} : vector<16x8xbf16>, vector<8x128xbf16>, vector<16x128xf32> -> vector<16x128xf32>
    %69 = vector.broadcast %5 : vector<16x1xf32> to vector<16x128xf32>
    %70 = arith.addf %68, %69 : vector<16x128xf32>
    %71 = arith.addf %66, %70 : vector<16x128xf32>
    %cst_35 = arith.constant 0.000000e+00 : f32
    %72 = vector.broadcast %cst_35 : f32 to vector<16x128xf32>
    %73 = arith.maximumf %71, %72 : vector<16x128xf32>
    %c1_36 = arith.constant 1 : index
    %c0_37 = arith.constant 0 : index
    %c0_38 = arith.constant 0 : index
    %74 = vector.load %arg9[%c1_36, %c0_37, %c0_38] : memref<2x16x128xf32, #tpu.memory_space<vmem>>, vector<1x16x128xf32>
    %75 = vector.shape_cast %74 : vector<1x16x128xf32> to vector<16x128xf32>
    %76 = vector.shape_cast %73 : vector<16x128xf32> to vector<1x16x128xf32>
    tpu.vector_store %arg9[%c1_36, %c0_37, %c0_38], %76 {strides = array<i32>} : memref<2x16x128xf32, #tpu.memory_space<vmem>>, vector<1x16x128xf32>,
    return
  }
  func.func @transform_0(%arg0: i32) -> (i32, i32, i32) {
    %c0_i32 = arith.constant 0 : i32
    %c0_i32_0 = arith.constant 0 : i32
    %c0_i32_1 = arith.constant 0 : i32
    return %arg0, %c0_i32, %c0_i32_0 : i32, i32, i32
  }
  func.func @transform_1(%arg0: i32) -> (i32, i32) {
    %c0_i32 = arith.constant 0 : i32
    %c0_i32_0 = arith.constant 0 : i32
    %c0_i32_1 = arith.constant 0 : i32
    return %c0_i32, %c0_i32_0 : i32, i32
  }
  func.func @transform_2(%arg0: i32) -> (i32, i32) {
    %c0_i32 = arith.constant 0 : i32
    %c0_i32_0 = arith.constant 0 : i32
    %c0_i32_1 = arith.constant 0 : i32
    return %c0_i32, %c0_i32_0 : i32, i32
  }
  func.func @transform_3(%arg0: i32) -> (i32, i32) {
    %c0_i32 = arith.constant 0 : i32
    %c0_i32_0 = arith.constant 0 : i32
    %c0_i32_1 = arith.constant 0 : i32
    return %c0_i32, %c0_i32_0 : i32, i32
  }
  func.func @transform_4(%arg0: i32) -> (i32, i32) {
    %c0_i32 = arith.constant 0 : i32
    %c0_i32_0 = arith.constant 0 : i32
    %c0_i32_1 = arith.constant 0 : i32
    return %c0_i32, %c0_i32_0 : i32, i32
  }
  func.func @transform_5(%arg0: i32) -> (i32, i32) {
    %c0_i32 = arith.constant 0 : i32
    %c0_i32_0 = arith.constant 0 : i32
    %c0_i32_1 = arith.constant 0 : i32
    return %c0_i32, %c0_i32_0 : i32, i32
  }
  func.func @transform_6(%arg0: i32) -> (i32, i32) {
    %c0_i32 = arith.constant 0 : i32
    %c0_i32_0 = arith.constant 0 : i32
    %c0_i32_1 = arith.constant 0 : i32
    return %c0_i32, %c0_i32_0 : i32, i32
  }
  func.func @transform_7(%arg0: i32) -> (i32, i32) {
    %c0_i32 = arith.constant 0 : i32
    %c0_i32_0 = arith.constant 0 : i32
    %c0_i32_1 = arith.constant 0 : i32
    return %c0_i32, %c0_i32_0 : i32, i32
  }
  func.func @transform_8(%arg0: i32) -> (i32, i32, i32) {
    %c0_i32 = arith.constant 0 : i32
    %c0_i32_0 = arith.constant 0 : i32
    %c0_i32_1 = arith.constant 0 : i32
    return %arg0, %c0_i32, %c0_i32_0 : i32, i32, i32
  }
}

</mosaic_0001>

<llo_original>
// kernel: tpu_custom_call.1
$region0: #{tpu_custom_call.1}
  #allocation0 [shape = 'u32[]', space=smem, size = 0x4, offset = 0x4, fixed_abs, tag = 'smem constant byte address 0x4 - core index']
  #allocation1 [shape = 'u32[144,128]{1,0:T(1,128)}', space=vmem, size = 0x12000, scoped, tag = 'internal scratch']
  %s0 = inlined_call_operand.vmem [shape: bf16[4,8,256], index: 0, kind: input, shape index: {}]
  %s1 = inlined_call_operand.vmem [shape: bf16[16,24], index: 1, kind: input, shape index: {}]
  %s2 = inlined_call_operand.vmem [shape: f32[16,1], index: 2, kind: input, shape index: {}]
  %s3 = inlined_call_operand.vmem [shape: bf16[16,48], index: 3, kind: input, shape index: {}]
  %s4 = inlined_call_operand.vmem [shape: f32[16,1], index: 4, kind: input, shape index: {}]
  %s5 = inlined_call_operand.vmem [shape: bf16[16,8], index: 5, kind: input, shape index: {}]
  %s6 = inlined_call_operand.vmem [shape: f32[16,1], index: 6, kind: input, shape index: {}]
  %s7 = inlined_call_operand.hbm [shape: bf16[256,128], index: 7, kind: input, shape index: {}]
  %s8 = inlined_call_operand.hbm [shape: f32[4,16,128], index: 8, kind: output, shape index: {}]
  %s9 = sld [smem:[#allocation0]]
  $region69: #{tpu_custom_call.1} parent=0
    _
  %s11 = ssub.s32 1, %s9
  %s12 = scalar_select 0, %s11, %s9
  $region1: #{tpu_custom_call.1} parent=0
    #allocation2 [shape = 'u8[65536]{0}', space=vmem, size = 0x10000, scoped, tag = 'input window, operand 7, single buffered']
    #allocation3 [shape = 's32[2]{0}', space=sflag, size = 0x8, scoped, tag = 'scoped memory for tpu_custom_call.1']
    #allocation4 [shape = 's32[2]{0}', space=sflag, size = 0x8, scoped, tag = 'scoped memory for tpu_custom_call.1']
    #allocation5 [shape = 'u8[32768]{0}', space=vmem, size = 0x8000, scoped, tag = 'output window, operand 0']
    %13 = vsyncpa [#allocation3], 0
    %14 = vsyncpa [#allocation4], 0
    %s15 = scalar_lea.sflag [#allocation4], 1
    %16 = vsyncpa %s15, 0
    loop: start=0, step=1, limit=4
    $region2: #{tpu_custom_call.1} parent=1 // loop_pre_header
      _
    $region3: #{tpu_custom_call.1} parent=1 // loop_header
      %s18 = sphi 0, %s22
      %p19 = scmp.ge.s32.totalorder %s18, 4
      %s28 = sphi 0, %s30
      %s31 = sphi 0, %s28
      %s32 = sphi 0, %s31
      %s48 = sphi 0, %s32
      %s52 = sphi 0, %s52
      %s54 = sphi 0, %s52
      %s55 = sphi 0, %s54
      %s69 = sphi 0, %s55
      %s73 = sphi 0, %s73
      %s75 = sphi 0, %s73
      %s76 = sphi 0, %s75
      %s90 = sphi 0, %s76
      %s94 = sphi 0, %s94
      %s96 = sphi 0, %s94
      %s97 = sphi 0, %s96
      %s111 = sphi 0, %s97
      %s115 = sphi 0, %s115
      %s117 = sphi 0, %s115
      %s118 = sphi 0, %s117
      %s132 = sphi 0, %s118
      %s136 = sphi 0, %s136
      %s138 = sphi 0, %s136
      %s139 = sphi 0, %s138
      %s153 = sphi 0, %s139
      %s157 = sphi 0, %s157
      %s159 = sphi 0, %s157
      %s160 = sphi 0, %s159
      %s174 = sphi 0, %s160
      %s178 = sphi 0, %s178
      %s180 = sphi 0, %s178
      %s181 = sphi 0, %s180
      %s195 = sphi 0, %s181
      %s201 = sphi 0, %s203
      %s204 = sphi 0, %s201
      %s205 = sphi 0, %s204
      %s221 = sphi 0, %s205
    $region4: #{tpu_custom_call.1} parent=1 // loop_header_branch
      %21 = sbr.rel (%p19) target = $region8
    $region5: #{tpu_custom_call.1} parent=1 // loop_body
      %s23 = ssub.s32 %s18, 1
      %s24 = ssub.s32 %s18, 2
      %s25 = sadd.s32 %s18, 1
      %s26 = ssub.s32 %s18, %s25
      %p27 = scmp.eq.s32.totalorder %s26, 0
      %s29 = sadd.s32 %s28, 1
      %s30 = scalar_select %p27, %s28, %s29
      %p33 = pneg %p27
      %p34 = scmp.eq.s32.totalorder %s18, 1
      %p35 = por %p33, %p34
      %p36 = scmp.ne.s32.totalorder %s28, %s31
      %p37 = scmp.eq.s32.totalorder %s18, 0
      %p38 = por %p36, %p37
      %p39 = scmp.ne.s32.totalorder %s28, %s31
      %p40 = scmp.eq.s32.totalorder %s23, 1
      %p41 = por %p39, %p40
      %p42 = scmp.ne.s32.totalorder %s31, %s32
      %p43 = scmp.eq.s32.totalorder %s23, 0
      %p44 = por %p42, %p43
      %p45 = scmp.ne.s32.totalorder %s31, %s32
      %p46 = scmp.eq.s32.totalorder %s24, 1
      %p47 = por %p45, %p46
      %p49 = scmp.ne.s32.totalorder %s32, %s48
      %p50 = scmp.eq.s32.totalorder %s24, 0
      %p51 = por %p49, %p50
      %s53 = sadd.s32 %s52, 1
      %p56 = scmp.eq.s32.totalorder %s18, 1
      %p57 = scmp.ne.s32.totalorder %s52, %s54
      %p58 = scmp.eq.s32.totalorder %s18, 0
      %p59 = por %p57, %p58
      %p60 = scmp.ne.s32.totalorder %s52, %s54
      %p61 = scmp.eq.s32.totalorder %s23, 1
      %p62 = por %p60, %p61
      %p63 = scmp.ne.s32.totalorder %s54, %s55
      %p64 = scmp.eq.s32.totalorder %s23, 0
      %p65 = por %p63, %p64
      %p66 = scmp.ne.s32.totalorder %s54, %s55
      %p67 = scmp.eq.s32.totalorder %s24, 1
      %p68 = por %p66, %p67
      %p70 = scmp.ne.s32.totalorder %s55, %s69
      %p71 = scmp.eq.s32.totalorder %s24, 0
      %p72 = por %p70, %p71
      %s74 = sadd.s32 %s73, 1
      %p77 = scmp.eq.s32.totalorder %s18, 1
      %p78 = scmp.ne.s32.totalorder %s73, %s75
      %p79 = scmp.eq.s32.totalorder %s18, 0
      %p80 = por %p78, %p79
      %p81 = scmp.ne.s32.totalorder %s73, %s75
      %p82 = scmp.eq.s32.totalorder %s23, 1
      %p83 = por %p81, %p82
      %p84 = scmp.ne.s32.totalorder %s75, %s76
      %p85 = scmp.eq.s32.totalorder %s23, 0
      %p86 = por %p84, %p85
      %p87 = scmp.ne.s32.totalorder %s75, %s76
      %p88 = scmp.eq.s32.totalorder %s24, 1
      %p89 = por %p87, %p88
      %p91 = scmp.ne.s32.totalorder %s76, %s90
      %p92 = scmp.eq.s32.totalorder %s24, 0
      %p93 = por %p91, %p92
      %s95 = sadd.s32 %s94, 1
      %p98 = scmp.eq.s32.totalorder %s18, 1
      %p99 = scmp.ne.s32.totalorder %s94, %s96
      %p100 = scmp.eq.s32.totalorder %s18, 0
      %p101 = por %p99, %p100
      %p102 = scmp.ne.s32.totalorder %s94, %s96
      %p103 = scmp.eq.s32.totalorder %s23, 1
      %p104 = por %p102, %p103
      %p105 = scmp.ne.s32.totalorder %s96, %s97
      %p106 = scmp.eq.s32.totalorder %s23, 0
      %p107 = por %p105, %p106
      %p108 = scmp.ne.s32.totalorder %s96, %s97
      %p109 = scmp.eq.s32.totalorder %s24, 1
      %p110 = por %p108, %p109
      %p112 = scmp.ne.s32.totalorder %s97, %s111
      %p113 = scmp.eq.s32.totalorder %s24, 0
      %p114 = por %p112, %p113
      %s116 = sadd.s32 %s115, 1
      %p119 = scmp.eq.s32.totalorder %s18, 1
      %p120 = scmp.ne.s32.totalorder %s115, %s117
      %p121 = scmp.eq.s32.totalorder %s18, 0
      %p122 = por %p120, %p121
      %p123 = scmp.ne.s32.totalorder %s115, %s117
      %p124 = scmp.eq.s32.totalorder %s23, 1
      %p125 = por %p123, %p124
      %p126 = scmp.ne.s32.totalorder %s117, %s118
      %p127 = scmp.eq.s32.totalorder %s23, 0
      %p128 = por %p126, %p127
      %p129 = scmp.ne.s32.totalorder %s117, %s118
      %p130 = scmp.eq.s32.totalorder %s24, 1
      %p131 = por %p129, %p130
      %p133 = scmp.ne.s32.totalorder %s118, %s132
      %p134 = scmp.eq.s32.totalorder %s24, 0
      %p135 = por %p133, %p134
      %s137 = sadd.s32 %s136, 1
      %p140 = scmp.eq.s32.totalorder %s18, 1
      %p141 = scmp.ne.s32.totalorder %s136, %s138
      %p142 = scmp.eq.s32.totalorder %s18, 0
      %p143 = por %p141, %p142
      %p144 = scmp.ne.s32.totalorder %s136, %s138
      %p145 = scmp.eq.s32.totalorder %s23, 1
      %p146 = por %p144, %p145
      %p147 = scmp.ne.s32.totalorder %s138, %s139
      %p148 = scmp.eq.s32.totalorder %s23, 0
      %p149 = por %p147, %p148
      %p150 = scmp.ne.s32.totalorder %s138, %s139
      %p151 = scmp.eq.s32.totalorder %s24, 1
      %p152 = por %p150, %p151
      %p154 = scmp.ne.s32.totalorder %s139, %s153
      %p155 = scmp.eq.s32.totalorder %s24, 0
      %p156 = por %p154, %p155
      %s158 = sadd.s32 %s157, 1
      %p161 = scmp.eq.s32.totalorder %s18, 1
      %p162 = scmp.ne.s32.totalorder %s157, %s159
      %p163 = scmp.eq.s32.totalorder %s18, 0
      %p164 = por %p162, %p163
      %p165 = scmp.ne.s32.totalorder %s157, %s159
      %p166 = scmp.eq.s32.totalorder %s23, 1
      %p167 = por %p165, %p166
      %p168 = scmp.ne.s32.totalorder %s159, %s160
      %p169 = scmp.eq.s32.totalorder %s23, 0
      %p170 = por %p168, %p169
      %p171 = scmp.ne.s32.totalorder %s159, %s160
      %p172 = scmp.eq.s32.totalorder %s24, 1
      %p173 = por %p171, %p172
      %p175 = scmp.ne.s32.totalorder %s160, %s174
      %p176 = scmp.eq.s32.totalorder %s24, 0
      %p177 = por %p175, %p176
      %s179 = sadd.s32 %s178, 1
      %p182 = scmp.eq.s32.totalorder %s18, 1
      %p183 = scmp.ne.s32.totalorder %s178, %s180
      %p184 = scmp.eq.s32.totalorder %s18, 0
      %p185 = por %p183, %p184
      %p186 = scmp.ne.s32.totalorder %s178, %s180
      %p187 = scmp.eq.s32.totalorder %s23, 1
      %p188 = por %p186, %p187
      %p189 = scmp.ne.s32.totalorder %s180, %s181
      %p190 = scmp.eq.s32.totalorder %s23, 0
      %p191 = por %p189, %p190
      %p192 = scmp.ne.s32.totalorder %s180, %s181
      %p193 = scmp.eq.s32.totalorder %s24, 1
      %p194 = por %p192, %p193
      %p196 = scmp.ne.s32.totalorder %s181, %s195
      %p197 = scmp.eq.s32.totalorder %s24, 0
      %p198 = por %p196, %p197
      %s199 = ssub.s32 %s18, %s25
      %p200 = scmp.eq.s32.totalorder %s199, 0
      %s202 = sadd.s32 %s201, 1
      %s203 = scalar_select %p200, %s201, %s202
      %p206 = pneg %p200
      %p207 = scmp.eq.s32.totalorder %s18, 1
      %p208 = por %p206, %p207
      %p209 = scmp.ne.s32.totalorder %s201, %s204
      %p210 = scmp.eq.s32.totalorder %s18, 0
      %p211 = por %p209, %p210
      %p212 = scmp.ne.s32.totalorder %s201, %s204
      %p213 = scmp.eq.s32.totalorder %s23, 1
      %p214 = por %p212, %p213
      %p215 = scmp.ne.s32.totalorder %s204, %s205
      %p216 = scmp.eq.s32.totalorder %s23, 0
      %p217 = por %p215, %p216
      %p218 = scmp.ne.s32.totalorder %s204, %s205
      %p219 = scmp.eq.s32.totalorder %s24, 1
      %p220 = por %p218, %p219
      %p222 = scmp.ne.s32.totalorder %s205, %s221
      %p223 = scmp.eq.s32.totalorder %s24, 0
      %p224 = por %p222, %p223
      %p225 = scmp.le.s32.totalorder 1, %s18
      %p226 = scmp.lt.s32.totalorder %s18, 3
      %p227 = pnand %p225, %p226
      %p228 = pneg %p227
      // Predicated region
      $region9: #{tpu_custom_call.1} parent=5 // pred_check
        _
      $region10: #{tpu_custom_call.1} parent=5 // pred_check_branch
        %230 = sbr.rel (%p227) target = $region12
      $region11: #{tpu_custom_call.1} parent=5 // pred_region
        %s231 = ssub.s32 %s18, 1
        // Predicated region
        $region13: #{tpu_custom_call.1} parent=11 // pred_check
          %p232 = pneg %p65
        $region14: #{tpu_custom_call.1} parent=11 // pred_check_branch
          %234 = sbr.rel (%p232) target = $region16
        $region15: #{tpu_custom_call.1} parent=11 // pred_region
          _
        $region16: #{tpu_custom_call.1} parent=11 // pred_fallthru
          _
        // Predicated region
        $region17: #{tpu_custom_call.1} parent=11 // pred_check
          %p235 = pneg %p86
        $region18: #{tpu_custom_call.1} parent=11 // pred_check_branch
          %237 = sbr.rel (%p235) target = $region20
        $region19: #{tpu_custom_call.1} parent=11 // pred_region
          _
        $region20: #{tpu_custom_call.1} parent=11 // pred_fallthru
          _
        // Predicated region
        $region21: #{tpu_custom_call.1} parent=11 // pred_check
          %p238 = pneg %p107
        $region22: #{tpu_custom_call.1} parent=11 // pred_check_branch
          %240 = sbr.rel (%p238) target = $region24
        $region23: #{tpu_custom_call.1} parent=11 // pred_region
          _
        $region24: #{tpu_custom_call.1} parent=11 // pred_fallthru
          _
        // Predicated region
        $region25: #{tpu_custom_call.1} parent=11 // pred_check
          %p241 = pneg %p128
        $region26: #{tpu_custom_call.1} parent=11 // pred_check_branch
          %243 = sbr.rel (%p241) target = $region28
        $region27: #{tpu_custom_call.1} parent=11 // pred_region
          _
        $region28: #{tpu_custom_call.1} parent=11 // pred_fallthru
          _
        // Predicated region
        $region29: #{tpu_custom_call.1} parent=11 // pred_check
          %p244 = pneg %p149
        $region30: #{tpu_custom_call.1} parent=11 // pred_check_branch
          %246 = sbr.rel (%p244) target = $region32
        $region31: #{tpu_custom_call.1} parent=11 // pred_region
          _
        $region32: #{tpu_custom_call.1} parent=11 // pred_fallthru
          _
        // Predicated region
        $region33: #{tpu_custom_call.1} parent=11 // pred_check
          %p247 = pneg %p170
        $region34: #{tpu_custom_call.1} parent=11 // pred_check_branch
          %249 = sbr.rel (%p247) target = $region36
        $region35: #{tpu_custom_call.1} parent=11 // pred_region
          _
        $region36: #{tpu_custom_call.1} parent=11 // pred_fallthru
          _
        // Predicated region
        $region37: #{tpu_custom_call.1} parent=11 // pred_check
          %p250 = pneg %p191
        $region38: #{tpu_custom_call.1} parent=11 // pred_check_branch
          %252 = sbr.rel (%p250) target = $region40
        $region39: #{tpu_custom_call.1} parent=11 // pred_region
          %s254 = ssub.s32 2048, 2048
          %255 = vsyncadd [#allocation3], %s254
          %s256 = sshll.u32 [#allocation2], 4
          %s257 = int_to_ptr.vmem [resolvable:$true] %s256
          %262 = dma.hbm_to_vmem [thread:$0]  %s7, 2048, %s257, [#allocation3], 64, 64, 4
        $region40: #{tpu_custom_call.1} parent=11 // pred_fallthru
          _
      $region12: #{tpu_custom_call.1} parent=5 // pred_fallthru
        _
      %p263 = scmp.lt.s32.totalorder %s18, 2
      // Predicated region
      $region41: #{tpu_custom_call.1} parent=5 // pred_check
        %p264 = pneg %p263
      $region42: #{tpu_custom_call.1} parent=5 // pred_check_branch
        %266 = sbr.rel (%p264) target = $region44
      $region43: #{tpu_custom_call.1} parent=5 // pred_region
        // Predicated region
        $region45: #{tpu_custom_call.1} parent=43 // pred_check
          %p267 = pneg %p38
        $region46: #{tpu_custom_call.1} parent=43 // pred_check_branch
          %269 = sbr.rel (%p267) target = $region48
        $region47: #{tpu_custom_call.1} parent=43 // pred_region
          %s270 = smul.u32 2, %s18
          %p271 = scmp.lt.s32.totalorder %s270, 3
          %s272 = scalar_select %p271, %s270, 3
          %s273 = smul.addr %s272, 2
          %s274 = smul.addr %s273, 4
          %s275 = scalar_lea.vmem %s0, %s274
          %s276 = smul.u32 2, %s18
        $region48: #{tpu_custom_call.1} parent=43 // pred_fallthru
          _
      $region44: #{tpu_custom_call.1} parent=5 // pred_fallthru
        _
      %p277 = scmp.le.s32.totalorder 1, %s18
      %p278 = scmp.lt.s32.totalorder %s18, 3
      %p279 = pnand %p277, %p278
      %p280 = pneg %p279
      // Predicated region
      $region49: #{tpu_custom_call.1} parent=5 // pred_check
        _
      $region50: #{tpu_custom_call.1} parent=5 // pred_check_branch
        %282 = sbr.rel (%p279) target = $region52
      $region51: #{tpu_custom_call.1} parent=5 // pred_region
        %s283 = ssub.s32 %s18, 1
        // Predicated region
        $region53: #{tpu_custom_call.1} parent=51 // pred_check
          %p284 = pneg %p191
        $region54: #{tpu_custom_call.1} parent=51 // pred_check_branch
          %286 = sbr.rel (%p284) target = $region56
        $region55: #{tpu_custom_call.1} parent=51 // pred_region
          %287 = dma.done [#allocation3], 2048
        $region56: #{tpu_custom_call.1} parent=51 // pred_fallthru
          _
        %s288 = smul.u32 2, %s23
        %p289 = scmp.lt.s32.totalorder %s288, 3
        %s290 = scalar_select %p289, %s288, 3
        %s291 = smul.addr %s290, 2
        %s292 = smul.addr %s291, 4
        %s293 = scalar_lea.vmem %s0, %s292
        %p294 = pneg %p44
        %p295 = pneg %p41
        %p296 = pneg %p65
        %p297 = pneg %p62
        %p298 = pneg %p86
        %p299 = pneg %p83
        %p300 = pneg %p107
        %p301 = pneg %p104
        %p302 = pneg %p128
        %p303 = pneg %p125
        %p304 = pneg %p149
        %p305 = pneg %p146
        %p306 = pneg %p170
        %p307 = pneg %p167
        %p308 = pneg %p191
        %p309 = pneg %p188
        %p310 = pneg %p217
        %p311 = pneg %p214
        %s312 = sand.u32 %s204, 1
        %s313 = scalar_lea.sflag [#allocation4], %s312
        %s314 = sand.u32 %s204, 1
        %s315 = smul.addr %s314, 32
        %s316 = scalar_lea.vmem [#allocation5], %s315
        %s317 = smul.u32 2, %s23
        %p318 = scmp.lt.s32.totalorder %s317, 3
        %s319 = scalar_select %p318, %s317, 3
        %s320 = smul.addr %s319, 2
        %s321 = smul.addr %s320, 4
        %s322 = scalar_lea.vmem %s0, %s321
        %s323 = smul.u32 2, %s23
        %s324 = smul.u32 2, %s23
        %v326 = vld [vmem:[%s1] sm:$0xf]
        %v327 = vld [vmem:[%s1 + $0x4] sm:$0xf]
        %v328 = vld [vmem:[%s2] sm:$0xff]
        %v329 = vld [vmem:[%s2 + $0x8] sm:$0xff]
        %v330 = vld [vmem:[%s3] sm:$0xf]
        %v331 = vld [vmem:[%s3 + $0x4] sm:$0xf]
        %v332 = vld [vmem:[%s4] sm:$0xff]
        %v333 = vld [vmem:[%s4 + $0x8] sm:$0xff]
        %v334 = vld [vmem:[%s5] sm:$0xf]
        %v335 = vld [vmem:[%s5 + $0x4] sm:$0xf]
        %v336 = vld [vmem:[%s6] sm:$0xff]
        %v337 = vld [vmem:[%s6 + $0x8] sm:$0xff]
        %v338 = vld [vmem:[#allocation2] sm:$0xf]
        %v339 = vld [vmem:[#allocation2 + $0x4] sm:$0xf]
        %v340 = vld [vmem:[#allocation2 + $0x8] sm:$0xf]
        %v341 = vld [vmem:[#allocation2 + $0xc] sm:$0xf]
        %v342 = vld [vmem:[#allocation2 + $0x10] sm:$0xf]
        %v343 = vld [vmem:[#allocation2 + $0x14] sm:$0xf]
        %v344 = vld [vmem:[#allocation2 + $0x18] sm:$0xf]
        %v345 = vld [vmem:[#allocation2 + $0x1c] sm:$0xf]
        %v346 = vld [vmem:[#allocation2 + $0x20] sm:$0xf]
        %v347 = vld [vmem:[#allocation2 + $0x24] sm:$0xf]
        %v348 = vld [vmem:[#allocation2 + $0x28] sm:$0xf]
        %v349 = vld [vmem:[#allocation2 + $0x2c] sm:$0xf]
        %v350 = vld [vmem:[#allocation2 + $0x30] sm:$0xf]
        %v351 = vld [vmem:[#allocation2 + $0x34] sm:$0xf]
        %v352 = vld [vmem:[#allocation2 + $0x38] sm:$0xf]
        %v353 = vld [vmem:[#allocation2 + $0x3c] sm:$0xf]
        %v354 = vld [vmem:[#allocation2 + $0x40] sm:$0xf]
        %v355 = vld [vmem:[#allocation2 + $0x44] sm:$0xf]
        %v356 = vld [vmem:[#allocation2 + $0x48] sm:$0xf]
        %v357 = vld [vmem:[#allocation2 + $0x4c] sm:$0xf]
        %v358 = vld [vmem:[#allocation2 + $0x50] sm:$0xf]
        %v359 = vld [vmem:[#allocation2 + $0x54] sm:$0xf]
        %v360 = vld [vmem:[#allocation2 + $0x58] sm:$0xf]
        %v361 = vld [vmem:[#allocation2 + $0x5c] sm:$0xf]
        %v362 = vld [vmem:[#allocation2 + $0x60] sm:$0xf]
        %v363 = vld [vmem:[#allocation2 + $0x64] sm:$0xf]
        %v364 = vld [vmem:[#allocation2 + $0x68] sm:$0xf]
        %v365 = vld [vmem:[#allocation2 + $0x6c] sm:$0xf]
        %v366 = vld [vmem:[#allocation2 + $0x70] sm:$0xf]
        %v367 = vld [vmem:[#allocation2 + $0x74] sm:$0xf]
        %v368 = vld [vmem:[#allocation2 + $0x78] sm:$0xf]
        %v369 = vld [vmem:[#allocation2 + $0x7c] sm:$0xf]
        %v370 = vld [vmem:[%s322] sm:$0xff]
        %v372 = vunpack.c.l.b16 %v370
        %v373 = vunpack.c.h.b16 %v370
        %v374 = vpack.c.b16 %v372, %v372
        %v375 = vpack.c.b16 %v373, %v373
        %376 = vrot.lane.b32.xlu0 %v374, 1
        %v377 = vpop.permute.xlu0 %376
        %378 = vrot.lane.b32.xlu0 %v375, 1
        %v379 = vpop.permute.xlu0 %378
        %vm380 = vcmask 7168
        %v381 = vsel %vm380, %v377, %v379
        %vm382 = vcmask 7168
        %v385 = vsel %vm382, 0, %v377
        %v387 = vsel %vm382, %v379, 0
        %v390 = vrot.slane %v385, 4
        %v391 = vrot.slane %v381, 4
        %v392 = vrot.slane %v387, 4
        %393 = vrot.lane.b32.xlu0 %v390, 127
        %v394 = vpop.permute.xlu0 %393
        %395 = vrot.lane.b32.xlu0 %v391, 127
        %v396 = vpop.permute.xlu0 %395
        %397 = vrot.lane.b32.xlu0 %v392, 127
        %v398 = vpop.permute.xlu0 %397
        %vm399 = vcmask 1039360
        %v400 = vsel %vm399, %v394, %v396
        %v401 = vsel %vm399, %v396, %v398
        %402 = vrot.lane.b32.xlu0 %v385, 126
        %v403 = vpop.permute.xlu0 %402
        %404 = vrot.lane.b32.xlu0 %v381, 126
        %v405 = vpop.permute.xlu0 %404
        %406 = vrot.lane.b32.xlu0 %v387, 126
        %v407 = vpop.permute.xlu0 %406
        %vm408 = vcmask 1031168
        %v409 = vsel %vm408, %v403, %v405
        %v410 = vsel %vm408, %v405, %v407
        %vm413 = vcmask 1043456
        %v415 = vsel %vm413, %v385, %v400
        %v419 = vsel %vm413, %v381, %v401
        %v453 = vunpack.c.l.b16 %v338
        %v454 = vunpack.c.l.b16 %v339
        %v455 = vunpack.c.l.b16 %v340
        %v456 = vunpack.c.l.b16 %v341
        %v457 = vunpack.c.l.b16 %v342
        %v458 = vunpack.c.l.b16 %v343
        %v459 = vunpack.c.l.b16 %v344
        %v460 = vunpack.c.l.b16 %v345
        %v461 = vunpack.c.l.b16 %v346
        %v462 = vunpack.c.l.b16 %v347
        %v463 = vunpack.c.l.b16 %v348
        %v464 = vunpack.c.l.b16 %v349
        %v465 = vunpack.c.l.b16 %v350
        %v466 = vunpack.c.l.b16 %v351
        %v467 = vunpack.c.l.b16 %v352
        %v468 = vunpack.c.l.b16 %v353
        %v469 = vunpack.c.l.b16 %v354
        %v470 = vunpack.c.l.b16 %v355
        %v471 = vunpack.c.l.b16 %v356
        %v472 = vunpack.c.l.b16 %v357
        %v473 = vunpack.c.l.b16 %v358
        %v474 = vunpack.c.l.b16 %v359
        %v475 = vunpack.c.l.b16 %v360
        %v476 = vunpack.c.l.b16 %v361
        %v477 = vunpack.c.l.b16 %v362
        %v478 = vunpack.c.l.b16 %v363
        %v479 = vunpack.c.l.b16 %v364
        %v480 = vunpack.c.l.b16 %v365
        %v481 = vunpack.c.l.b16 %v366
        %v482 = vunpack.c.l.b16 %v367
        %v483 = vunpack.c.l.b16 %v368
        %v484 = vunpack.c.l.b16 %v369
        %v485 = vpack.c.b16 %v454, %v453
        %v486 = vpack.c.b16 %v456, %v455
        %v487 = vpack.c.b16 %v458, %v457
        %v488 = vpack.c.b16 %v460, %v459
        %v489 = vpack.c.b16 %v462, %v461
        %v490 = vpack.c.b16 %v464, %v463
        %v491 = vpack.c.b16 %v466, %v465
        %v492 = vpack.c.b16 %v468, %v467
        %v493 = vpack.c.b16 %v470, %v469
        %v494 = vpack.c.b16 %v472, %v471
        %v495 = vpack.c.b16 %v474, %v473
        %v496 = vpack.c.b16 %v476, %v475
        %v497 = vpack.c.b16 %v478, %v477
        %v498 = vpack.c.b16 %v480, %v479
        %v499 = vpack.c.b16 %v482, %v481
        %v500 = vpack.c.b16 %v484, %v483
        %517 = vmatprep.subr.bf16.mxu0 0
        %518 = vmatpush1.bf16.msra.mxu0 %v492
        %519 = vmatprep.subr.bf16.mxu0 0
        %520 = vmatpush1.bf16.msra.mxu0 %v491
        %521 = vmatprep.subr.bf16.mxu0 0
        %522 = vmatpush1.bf16.msra.mxu0 %v490
        %523 = vmatprep.subr.bf16.mxu0 0
        %524 = vmatpush1.bf16.msra.mxu0 %v489
        %525 = vmatprep.subr.bf16.mxu0 0
        %526 = vmatpush1.bf16.msra.mxu0 %v488
        %527 = vmatprep.subr.bf16.mxu0 0
        %528 = vmatpush1.bf16.msra.mxu0 %v487
        %529 = vmatprep.subr.bf16.mxu0 0
        %530 = vmatpush1.bf16.msra.mxu0 %v486
        %531 = vmatprep.subr.bf16.mxu0 0
        %532 = vmatpush1.bf16.msra.mxu0 %v485
        %533 = vmatprep.subr.bf16.mxu0 0
        %534 = vmatpush2.bf16.msra.mxu0 %v500
        %535 = vmatprep.subr.bf16.mxu0 0
        %536 = vmatpush2.bf16.msra.mxu0 %v499
        %537 = vmatprep.subr.bf16.mxu0 0
        %538 = vmatpush2.bf16.msra.mxu0 %v498
        %539 = vmatprep.subr.bf16.mxu0 0
        %540 = vmatpush2.bf16.msra.mxu0 %v497
        %541 = vmatprep.subr.bf16.mxu0 0
        %542 = vmatpush2.bf16.msra.mxu0 %v496
        %543 = vmatprep.subr.bf16.mxu0 0
        %544 = vmatpush2.bf16.msra.mxu0 %v495
        %545 = vmatprep.subr.bf16.mxu0 0
        %546 = vmatpush2.bf16.msra.mxu0 %v494
        %547 = vmatprep.subr.bf16.mxu0 0
        %548 = vmatpush2.bf16.msra.mxu0 %v493
        %549 = vmatprep.mubr.bf16.mxu0 %v419
        %550 = vmatmul.mubr.bf16.gmra.mxu0 %v415
        %v551 = vpop.f32.mrf.mxu0
        %v552 = vadd.f32 0.0, %v551
        %v553 = vpop.f32.mrf.mxu0
        %v554 = vpop.f32.mrf.mxu0
        %v555 = vadd.f32 0.0, %v554
        %v556 = vpop.f32.mrf.mxu0
        %557 = vmatprep.mubr.bf16.mxu0 %v410
        %558 = vmatmul.mubr.bf16.gmra.mxu0 %v409
        %v559 = vpop.f32.mrf.mxu0
        %v560 = vadd.f32 0.0, %v559
        %v561 = vpop.f32.mrf.mxu0
        %v562 = vpop.f32.mrf.mxu0
        %v563 = vpop.f32.mrf.mxu0
        %564 = vdwg.mxu0
        %v565 = vpack.c.bf16 %v555, %v552
        %v566 = vpack.c.bf16 %v560, %v560
        %568 = vset.pattern.permute.xlu0 0
        %569 = vperm.xlu0 %568, %v328
        %v570 = vpop.permute.xlu0 %569
        %573 = vset.pattern.permute.xlu0 0
        %574 = vperm.xlu0 %573, %v329
        %v575 = vpop.permute.xlu0 %574
        %v579 = vunpack.c.l.b16 %v326
        %v580 = vunpack.c.l.b16 %v327
        %v581 = vpack.c.b16 %v580, %v579
        %vm582 = vcmask 195584
        %v584 = vsel %vm582, %v581, 0
        %v587 = vsel %vm413, %v566, 0
        %589 = vmatprep.subr.bf16.mxu0 0
        %590 = vmatpush1.bf16.msra.mxu0 0
        %591 = vmatprep.subr.bf16.mxu0 0
        %592 = vmatpush1.bf16.msra.mxu0 0
        %593 = vmatprep.subr.bf16.mxu0 0
        %594 = vmatpush1.bf16.msra.mxu0 0
        %595 = vmatprep.subr.bf16.mxu0 0
        %596 = vmatpush1.bf16.msra.mxu0 0
        %597 = vmatprep.subr.bf16.mxu0 0
        %598 = vmatpush1.bf16.msra.mxu0 0
        %599 = vmatprep.subr.bf16.mxu0 0
        %600 = vmatpush1.bf16.msra.mxu0 0
        %601 = vmatprep.subr.bf16.mxu0 0
        %602 = vmatpush1.bf16.msra.mxu0 %v587
        %603 = vmatprep.subr.bf16.mxu0 0
        %604 = vmatpush1.bf16.msra.mxu0 %v565
        %605 = vmatprep.subr.bf16.mxu0 0
        %606 = vmatpush2.bf16.msra.mxu0 0
        %607 = vmatprep.subr.bf16.mxu0 0
        %608 = vmatpush2.bf16.msra.mxu0 0
        %609 = vmatprep.subr.bf16.mxu0 0
        %610 = vmatpush2.bf16.msra.mxu0 0
        %611 = vmatprep.subr.bf16.mxu0 0
        %612 = vmatpush2.bf16.msra.mxu0 0
        %613 = vmatprep.subr.bf16.mxu0 0
        %614 = vmatpush2.bf16.msra.mxu0 0
        %615 = vmatprep.subr.bf16.mxu0 0
        %616 = vmatpush2.bf16.msra.mxu0 0
        %617 = vmatprep.subr.bf16.mxu0 0
        %618 = vmatpush2.bf16.msra.mxu0 0
        %619 = vmatprep.subr.bf16.mxu0 0
        %620 = vmatpush2.bf16.msra.mxu0 0
        %621 = vmatprep.mubr.bf16.mxu0 0
        %622 = vmatmul.mubr.bf16.gmra.mxu0 %v584
        %v623 = vpop.f32.mrf.mxu0
        %v624 = vadd.f32 %v570, %v623
        %v625 = vpop.f32.mrf.mxu0
        %v626 = vpop.f32.mrf.mxu0
        %v627 = vadd.f32 %v575, %v626
        %v628 = vpop.f32.mrf.mxu0
        %629 = vdwg.mxu0
        %v630 = vmax.f32 %v624, 0.0
        %v631 = vmax.f32 %v627, 0.0
        %v632 = vpack.c.bf16 %v631, %v630
        %634 = vrot.lane.b32.xlu0 %v632, 1
        %v635 = vpop.permute.xlu0 %634
        %v637 = vsel %vm382, 0, %v635
        %v639 = vsel %vm382, %v635, 0
        %642 = vrot.lane.b32.xlu0 %v637, 127
        %v643 = vpop.permute.xlu0 %642
        %644 = vrot.lane.b32.xlu0 %v639, 127
        %v645 = vpop.permute.xlu0 %644
        %v646 = vsel %vm399, %v643, %v645
        %648 = vrot.lane.b32.xlu0 %v637, 126
        %v649 = vpop.permute.xlu0 %648
        %650 = vrot.lane.b32.xlu0 %v639, 126
        %v651 = vpop.permute.xlu0 %650
        %v652 = vsel %vm408, %v649, %v651
        %655 = vset.pattern.permute.xlu0 0
        %656 = vperm.xlu0 %655, %v332
        %v657 = vpop.permute.xlu0 %656
        %660 = vset.pattern.permute.xlu0 0
        %661 = vperm.xlu0 %660, %v333
        %v662 = vpop.permute.xlu0 %661
        %v666 = vunpack.c.l.b16 %v330
        %v667 = vunpack.c.l.b16 %v331
        %v668 = vpack.c.b16 %v667, %v666
        %vm669 = vcmask 392192
        %v671 = vsel %vm669, %v668, 0
        %673 = vmatprep.subr.bf16.mxu0 0
        %674 = vmatpush1.bf16.msra.mxu0 0
        %675 = vmatprep.subr.bf16.mxu0 0
        %676 = vmatpush1.bf16.msra.mxu0 0
        %677 = vmatprep.subr.bf16.mxu0 0
        %678 = vmatpush1.bf16.msra.mxu0 0
        %679 = vmatprep.subr.bf16.mxu0 0
        %680 = vmatpush1.bf16.msra.mxu0 0
        %681 = vmatprep.subr.bf16.mxu0 0
        %682 = vmatpush1.bf16.msra.mxu0 0
        %683 = vmatprep.subr.bf16.mxu0 0
        %684 = vmatpush1.bf16.msra.mxu0 %v652
        %685 = vmatprep.subr.bf16.mxu0 0
        %686 = vmatpush1.bf16.msra.mxu0 %v646
        %687 = vmatprep.subr.bf16.mxu0 0
        %688 = vmatpush1.bf16.msra.mxu0 %v637
        %689 = vmatprep.subr.bf16.mxu0 0
        %690 = vmatpush2.bf16.msra.mxu0 0
        %691 = vmatprep.subr.bf16.mxu0 0
        %692 = vmatpush2.bf16.msra.mxu0 0
        %693 = vmatprep.subr.bf16.mxu0 0
        %694 = vmatpush2.bf16.msra.mxu0 0
        %695 = vmatprep.subr.bf16.mxu0 0
        %696 = vmatpush2.bf16.msra.mxu0 0
        %697 = vmatprep.subr.bf16.mxu0 0
        %698 = vmatpush2.bf16.msra.mxu0 0
        %699 = vmatprep.subr.bf16.mxu0 0
        %700 = vmatpush2.bf16.msra.mxu0 0
        %701 = vmatprep.subr.bf16.mxu0 0
        %702 = vmatpush2.bf16.msra.mxu0 0
        %703 = vmatprep.subr.bf16.mxu0 0
        %704 = vmatpush2.bf16.msra.mxu0 0
        %705 = vmatprep.mubr.bf16.mxu0 0
        %706 = vmatmul.mubr.bf16.gmra.mxu0 %v671
        %v707 = vpop.f32.mrf.mxu0
        %v708 = vadd.f32 %v657, %v707
        %v709 = vpop.f32.mrf.mxu0
        %v710 = vpop.f32.mrf.mxu0
        %v711 = vadd.f32 %v662, %v710
        %v712 = vpop.f32.mrf.mxu0
        %713 = vdwg.mxu0
        %715 = vset.pattern.permute.xlu0 0
        %716 = vperm.xlu0 %715, %v336
        %v717 = vpop.permute.xlu0 %716
        %720 = vset.pattern.permute.xlu0 0
        %721 = vperm.xlu0 %720, %v337
        %v722 = vpop.permute.xlu0 %721
        %v726 = vunpack.c.l.b16 %v334
        %v727 = vunpack.c.l.b16 %v335
        %v728 = vpack.c.b16 %v727, %v726
        %v730 = vrot.slane %v565, 4
        %vm731 = vcmask 64512
        %v733 = vsel %vm731, %v728, 0
        %v736 = vsel %vm413, %v730, 0
        %738 = vmatprep.subr.bf16.mxu0 0
        %739 = vmatpush1.bf16.msra.mxu0 0
        %740 = vmatprep.subr.bf16.mxu0 0
        %741 = vmatpush1.bf16.msra.mxu0 0
        %742 = vmatprep.subr.bf16.mxu0 0
        %743 = vmatpush1.bf16.msra.mxu0 0
        %744 = vmatprep.subr.bf16.mxu0 0
        %745 = vmatpush1.bf16.msra.mxu0 0
        %746 = vmatprep.subr.bf16.mxu0 0
        %747 = vmatpush1.bf16.msra.mxu0 0
        %748 = vmatprep.subr.bf16.mxu0 0
        %749 = vmatpush1.bf16.msra.mxu0 0
        %750 = vmatprep.subr.bf16.mxu0 0
        %751 = vmatpush1.bf16.msra.mxu0 0
        %752 = vmatprep.subr.bf16.mxu0 0
        %753 = vmatpush1.bf16.msra.mxu0 %v736
        %754 = vmatprep.subr.bf16.mxu0 0
        %755 = vmatpush2.bf16.msra.mxu0 0
        %756 = vmatprep.subr.bf16.mxu0 0
        %757 = vmatpush2.bf16.msra.mxu0 0
        %758 = vmatprep.subr.bf16.mxu0 0
        %759 = vmatpush2.bf16.msra.mxu0 0
        %760 = vmatprep.subr.bf16.mxu0 0
        %761 = vmatpush2.bf16.msra.mxu0 0
        %762 = vmatprep.subr.bf16.mxu0 0
        %763 = vmatpush2.bf16.msra.mxu0 0
        %764 = vmatprep.subr.bf16.mxu0 0
        %765 = vmatpush2.bf16.msra.mxu0 0
        %766 = vmatprep.subr.bf16.mxu0 0
        %767 = vmatpush2.bf16.msra.mxu0 0
        %768 = vmatprep.subr.bf16.mxu0 0
        %769 = vmatpush2.bf16.msra.mxu0 0
        %770 = vmatprep.mubr.bf16.mxu0 0
        %771 = vmatmul.mubr.bf16.gmra.mxu0 %v733
        %v772 = vpop.f32.mrf.mxu0
        %v773 = vadd.f32 %v717, %v772
        %v774 = vpop.f32.mrf.mxu0
        %v775 = vpop.f32.mrf.mxu0
        %v776 = vadd.f32 %v722, %v775
        %v777 = vpop.f32.mrf.mxu0
        %778 = vdwg.mxu0
        %v779 = vadd.f32 %v708, %v773
        %v780 = vadd.f32 %v711, %v776
        %v781 = vmax.f32 %v779, 0.0
        %v782 = vmax.f32 %v780, 0.0
        %783 = vst [vmem:[%s316] sm:$0xff] %v781
        %784 = vst [vmem:[%s316 + $0x8] sm:$0xff] %v782
        %s785 = scalar_lea.vmem %s322, 8
        %v786 = vld [vmem:[%s785] sm:$0xff]
        %v788 = vunpack.c.l.b16 %v786
        %v789 = vunpack.c.h.b16 %v786
        %v790 = vpack.c.b16 %v788, %v788
        %v791 = vpack.c.b16 %v789, %v789
        %792 = vrot.lane.b32.xlu0 %v790, 1
        %v793 = vpop.permute.xlu0 %792
        %794 = vrot.lane.b32.xlu0 %v791, 1
        %v795 = vpop.permute.xlu0 %794
        %v796 = vsel %vm380, %v793, %v795
        %v798 = vsel %vm382, 0, %v793
        %v800 = vsel %vm382, %v795, 0
        %v803 = vrot.slane %v798, 4
        %v804 = vrot.slane %v796, 4
        %v805 = vrot.slane %v800, 4
        %806 = vrot.lane.b32.xlu0 %v803, 127
        %v807 = vpop.permute.xlu0 %806
        %808 = vrot.lane.b32.xlu0 %v804, 127
        %v809 = vpop.permute.xlu0 %808
        %810 = vrot.lane.b32.xlu0 %v805, 127
        %v811 = vpop.permute.xlu0 %810
        %v812 = vsel %vm399, %v807, %v809
        %v813 = vsel %vm399, %v809, %v811
        %814 = vrot.lane.b32.xlu0 %v798, 126
        %v815 = vpop.permute.xlu0 %814
        %816 = vrot.lane.b32.xlu0 %v796, 126
        %v817 = vpop.permute.xlu0 %816
        %818 = vrot.lane.b32.xlu0 %v800, 126
        %v819 = vpop.permute.xlu0 %818
        %v820 = vsel %vm408, %v815, %v817
        %v821 = vsel %vm408, %v817, %v819
        %v825 = vsel %vm413, %v798, %v812
        %v829 = vsel %vm413, %v796, %v813
        %831 = vmatprep.subr.bf16.mxu0 0
        %832 = vmatpush1.bf16.msra.mxu0 %v492
        %833 = vmatprep.subr.bf16.mxu0 0
        %834 = vmatpush1.bf16.msra.mxu0 %v491
        %835 = vmatprep.subr.bf16.mxu0 0
        %836 = vmatpush1.bf16.msra.mxu0 %v490
        %837 = vmatprep.subr.bf16.mxu0 0
        %838 = vmatpush1.bf16.msra.mxu0 %v489
        %839 = vmatprep.subr.bf16.mxu0 0
        %840 = vmatpush1.bf16.msra.mxu0 %v488
        %841 = vmatprep.subr.bf16.mxu0 0
        %842 = vmatpush1.bf16.msra.mxu0 %v487
        %843 = vmatprep.subr.bf16.mxu0 0
        %844 = vmatpush1.bf16.msra.mxu0 %v486
        %845 = vmatprep.subr.bf16.mxu0 0
        %846 = vmatpush1.bf16.msra.mxu0 %v485
        %847 = vmatprep.subr.bf16.mxu0 0
        %848 = vmatpush2.bf16.msra.mxu0 %v500
        %849 = vmatprep.subr.bf16.mxu0 0
        %850 = vmatpush2.bf16.msra.mxu0 %v499
        %851 = vmatprep.subr.bf16.mxu0 0
        %852 = vmatpush2.bf16.msra.mxu0 %v498
        %853 = vmatprep.subr.bf16.mxu0 0
        %854 = vmatpush2.bf16.msra.mxu0 %v497
        %855 = vmatprep.subr.bf16.mxu0 0
        %856 = vmatpush2.bf16.msra.mxu0 %v496
        %857 = vmatprep.subr.bf16.mxu0 0
        %858 = vmatpush2.bf16.msra.mxu0 %v495
        %859 = vmatprep.subr.bf16.mxu0 0
        %860 = vmatpush2.bf16.msra.mxu0 %v494
        %861 = vmatprep.subr.bf16.mxu0 0
        %862 = vmatpush2.bf16.msra.mxu0 %v493
        %863 = vmatprep.mubr.bf16.mxu0 %v829
        %864 = vmatmul.mubr.bf16.gmra.mxu0 %v825
        %v865 = vpop.f32.mrf.mxu0
        %v866 = vadd.f32 0.0, %v865
        %v867 = vpop.f32.mrf.mxu0
        %v868 = vpop.f32.mrf.mxu0
        %v869 = vadd.f32 0.0, %v868
        %v870 = vpop.f32.mrf.mxu0
        %871 = vmatprep.mubr.bf16.mxu0 %v821
        %872 = vmatmul.mubr.bf16.gmra.mxu0 %v820
        %v873 = vpop.f32.mrf.mxu0
        %v874 = vadd.f32 0.0, %v873
        %v875 = vpop.f32.mrf.mxu0
        %v876 = vpop.f32.mrf.mxu0
        %v877 = vpop.f32.mrf.mxu0
        %878 = vdwg.mxu0
        %v879 = vpack.c.bf16 %v869, %v866
        %v880 = vpack.c.bf16 %v874, %v874
        %v882 = vsel %vm413, %v880, 0
        %884 = vmatprep.subr.bf16.mxu0 0
        %885 = vmatpush1.bf16.msra.mxu0 0
        %886 = vmatprep.subr.bf16.mxu0 0
        %887 = vmatpush1.bf16.msra.mxu0 0
        %888 = vmatprep.subr.bf16.mxu0 0
        %889 = vmatpush1.bf16.msra.mxu0 0
        %890 = vmatprep.subr.bf16.mxu0 0
        %891 = vmatpush1.bf16.msra.mxu0 0
        %892 = vmatprep.subr.bf16.mxu0 0
        %893 = vmatpush1.bf16.msra.mxu0 0
        %894 = vmatprep.subr.bf16.mxu0 0
        %895 = vmatpush1.bf16.msra.mxu0 0
        %896 = vmatprep.subr.bf16.mxu0 0
        %897 = vmatpush1.bf16.msra.mxu0 %v882
        %898 = vmatprep.subr.bf16.mxu0 0
        %899 = vmatpush1.bf16.msra.mxu0 %v879
        %900 = vmatprep.subr.bf16.mxu0 0
        %901 = vmatpush2.bf16.msra.mxu0 0
        %902 = vmatprep.subr.bf16.mxu0 0
        %903 = vmatpush2.bf16.msra.mxu0 0
        %904 = vmatprep.subr.bf16.mxu0 0
        %905 = vmatpush2.bf16.msra.mxu0 0
        %906 = vmatprep.subr.bf16.mxu0 0
        %907 = vmatpush2.bf16.msra.mxu0 0
        %908 = vmatprep.subr.bf16.mxu0 0
        %909 = vmatpush2.bf16.msra.mxu0 0
        %910 = vmatprep.subr.bf16.mxu0 0
        %911 = vmatpush2.bf16.msra.mxu0 0
        %912 = vmatprep.subr.bf16.mxu0 0
        %913 = vmatpush2.bf16.msra.mxu0 0
        %914 = vmatprep.subr.bf16.mxu0 0
        %915 = vmatpush2.bf16.msra.mxu0 0
        %916 = vmatprep.mubr.bf16.mxu0 0
        %917 = vmatmul.mubr.bf16.gmra.mxu0 %v584
        %v918 = vpop.f32.mrf.mxu0
        %v919 = vadd.f32 %v570, %v918
        %v920 = vpop.f32.mrf.mxu0
        %v921 = vpop.f32.mrf.mxu0
        %v922 = vadd.f32 %v575, %v921
        %v923 = vpop.f32.mrf.mxu0
        %924 = vdwg.mxu0
        %v925 = vmax.f32 %v919, 0.0
        %v926 = vmax.f32 %v922, 0.0
        %v927 = vpack.c.bf16 %v926, %v925
        %929 = vrot.lane.b32.xlu0 %v927, 1
        %v930 = vpop.permute.xlu0 %929
        %v932 = vsel %vm382, 0, %v930
        %v934 = vsel %vm382, %v930, 0
        %937 = vrot.lane.b32.xlu0 %v932, 127
        %v938 = vpop.permute.xlu0 %937
        %939 = vrot.lane.b32.xlu0 %v934, 127
        %v940 = vpop.permute.xlu0 %939
        %v941 = vsel %vm399, %v938, %v940
        %943 = vrot.lane.b32.xlu0 %v932, 126
        %v944 = vpop.permute.xlu0 %943
        %945 = vrot.lane.b32.xlu0 %v934, 126
        %v946 = vpop.permute.xlu0 %945
        %v947 = vsel %vm408, %v944, %v946
        %949 = vmatprep.subr.bf16.mxu0 0
        %950 = vmatpush1.bf16.msra.mxu0 0
        %951 = vmatprep.subr.bf16.mxu0 0
        %952 = vmatpush1.bf16.msra.mxu0 0
        %953 = vmatprep.subr.bf16.mxu0 0
        %954 = vmatpush1.bf16.msra.mxu0 0
        %955 = vmatprep.subr.bf16.mxu0 0
        %956 = vmatpush1.bf16.msra.mxu0 0
        %957 = vmatprep.subr.bf16.mxu0 0
        %958 = vmatpush1.bf16.msra.mxu0 0
        %959 = vmatprep.subr.bf16.mxu0 0
        %960 = vmatpush1.bf16.msra.mxu0 %v947
        %961 = vmatprep.subr.bf16.mxu0 0
        %962 = vmatpush1.bf16.msra.mxu0 %v941
        %963 = vmatprep.subr.bf16.mxu0 0
        %964 = vmatpush1.bf16.msra.mxu0 %v932
        %965 = vmatprep.subr.bf16.mxu0 0
        %966 = vmatpush2.bf16.msra.mxu0 0
        %967 = vmatprep.subr.bf16.mxu0 0
        %968 = vmatpush2.bf16.msra.mxu0 0
        %969 = vmatprep.subr.bf16.mxu0 0
        %970 = vmatpush2.bf16.msra.mxu0 0
        %971 = vmatprep.subr.bf16.mxu0 0
        %972 = vmatpush2.bf16.msra.mxu0 0
        %973 = vmatprep.subr.bf16.mxu0 0
        %974 = vmatpush2.bf16.msra.mxu0 0
        %975 = vmatprep.subr.bf16.mxu0 0
        %976 = vmatpush2.bf16.msra.mxu0 0
        %977 = vmatprep.subr.bf16.mxu0 0
        %978 = vmatpush2.bf16.msra.mxu0 0
        %979 = vmatprep.subr.bf16.mxu0 0
        %980 = vmatpush2.bf16.msra.mxu0 0
        %981 = vmatprep.mubr.bf16.mxu0 0
        %982 = vmatmul.mubr.bf16.gmra.mxu0 %v671
        %v983 = vpop.f32.mrf.mxu0
        %v984 = vadd.f32 %v657, %v983
        %v985 = vpop.f32.mrf.mxu0
        %v986 = vpop.f32.mrf.mxu0
        %v987 = vadd.f32 %v662, %v986
        %v988 = vpop.f32.mrf.mxu0
        %989 = vdwg.mxu0
        %v991 = vrot.slane %v879, 4
        %v993 = vsel %vm413, %v991, 0
        %995 = vmatprep.subr.bf16.mxu0 0
        %996 = vmatpush1.bf16.msra.mxu0 0
        %997 = vmatprep.subr.bf16.mxu0 0
        %998 = vmatpush1.bf16.msra.mxu0 0
        %999 = vmatprep.subr.bf16.mxu0 0
        %1000 = vmatpush1.bf16.msra.mxu0 0
        %1001 = vmatprep.subr.bf16.mxu0 0
        %1002 = vmatpush1.bf16.msra.mxu0 0
        %1003 = vmatprep.subr.bf16.mxu0 0
        %1004 = vmatpush1.bf16.msra.mxu0 0
        %1005 = vmatprep.subr.bf16.mxu0 0
        %1006 = vmatpush1.bf16.msra.mxu0 0
        %1007 = vmatprep.subr.bf16.mxu0 0
        %1008 = vmatpush1.bf16.msra.mxu0 0
        %1009 = vmatprep.subr.bf16.mxu0 0
        %1010 = vmatpush1.bf16.msra.mxu0 %v993
        %1011 = vmatprep.subr.bf16.mxu0 0
        %1012 = vmatpush2.bf16.msra.mxu0 0
        %1013 = vmatprep.subr.bf16.mxu0 0
        %1014 = vmatpush2.bf16.msra.mxu0 0
        %1015 = vmatprep.subr.bf16.mxu0 0
        %1016 = vmatpush2.bf16.msra.mxu0 0
        %1017 = vmatprep.subr.bf16.mxu0 0
        %1018 = vmatpush2.bf16.msra.mxu0 0
        %1019 = vmatprep.subr.bf16.mxu0 0
        %1020 = vmatpush2.bf16.msra.mxu0 0
        %1021 = vmatprep.subr.bf16.mxu0 0
        %1022 = vmatpush2.bf16.msra.mxu0 0
        %1023 = vmatprep.subr.bf16.mxu0 0
        %1024 = vmatpush2.bf16.msra.mxu0 0
        %1025 = vmatprep.subr.bf16.mxu0 0
        %1026 = vmatpush2.bf16.msra.mxu0 0
        %1027 = vmatprep.mubr.bf16.mxu0 0
        %1028 = vmatmul.mubr.bf16.gmra.mxu0 %v733
        %v1029 = vpop.f32.mrf.mxu0
        %v1030 = vadd.f32 %v717, %v1029
        %v1031 = vpop.f32.mrf.mxu0
        %v1032 = vpop.f32.mrf.mxu0
        %v1033 = vadd.f32 %v722, %v1032
        %v1034 = vpop.f32.mrf.mxu0
        %1035 = vdwg.mxu0
        %v1036 = vadd.f32 %v984, %v1030
        %v1037 = vadd.f32 %v987, %v1033
        %v1038 = vmax.f32 %v1036, 0.0
        %v1039 = vmax.f32 %v1037, 0.0
        %s1040 = scalar_lea.vmem %s316, 16 [#allocation5]
        %1041 = vst [vmem:[%s1040] sm:$0xff] %v1038
        %1042 = vst [vmem:[%s1040 + $0x8] sm:$0xff] %v1039
        %s1043 = sand.u32 %s204, 1
        %s1044 = scalar_lea.sflag [#allocation4], %s1043
        %s1045 = sand.u32 %s204, 1
        %s1046 = smul.addr %s1045, 32
        %s1047 = scalar_lea.vmem [#allocation5], %s1046
        // Predicated region
        $region57: #{tpu_custom_call.1} parent=51 // pred_check
          %p1048 = pneg %p214
        $region58: #{tpu_custom_call.1} parent=51 // pred_check_branch
          %1050 = sbr.rel (%p1048) target = $region60
        $region59: #{tpu_custom_call.1} parent=51 // pred_region
          %s1051 = smul.u32 2, %s23
          %s1053 = ssub.s32 512, 512
          %1054 = vsyncadd %s1044, %s1053
          %s1055 = smul.addr %s1051, 2
          %s1056 = smul.addr %s1055, 128
          %s1057 = scalar_lea.hbm %s8, %s1056
          %s1058 = sshll.u32 %s1047, 4
          %s1059 = int_to_ptr.vmem [resolvable:$true] %s1058
          %1064 = dma.vmem_to_hbm [thread:$0]  %s1059, 512, %s1057, %s1044, 128, 128, 8
        $region60: #{tpu_custom_call.1} parent=51 // pred_fallthru
          _
      $region52: #{tpu_custom_call.1} parent=5 // pred_fallthru
        _
      %p1065 = scmp.le.s32.totalorder 2, %s18
      // Predicated region
      $region61: #{tpu_custom_call.1} parent=5 // pred_check
        %p1066 = pneg %p1065
      $region62: #{tpu_custom_call.1} parent=5 // pred_check_branch
        %1068 = sbr.rel (%p1066) target = $region64
      $region63: #{tpu_custom_call.1} parent=5 // pred_region
        %s1069 = ssub.s32 %s18, 2
        // Predicated region
        $region65: #{tpu_custom_call.1} parent=63 // pred_check
          %p1070 = pneg %p220
        $region66: #{tpu_custom_call.1} parent=63 // pred_check_branch
          %1072 = sbr.rel (%p1070) target = $region68
        $region67: #{tpu_custom_call.1} parent=63 // pred_region
          %s1073 = sand.u32 %s205, 1
          %s1074 = scalar_lea.sflag [#allocation4], %s1073
          %s1075 = sand.u32 %s205, 1
          %s1076 = smul.addr %s1075, 32
          %s1077 = scalar_lea.vmem [#allocation5], %s1076
          %1078 = dma.done %s1074, 512
        $region68: #{tpu_custom_call.1} parent=63 // pred_fallthru
          _
      $region64: #{tpu_custom_call.1} parent=5 // pred_fallthru
        _
    $region6: #{tpu_custom_call.1} parent=1 // loop_footer
      %s22 = sadd.s32 1, %s18
    $region7: #{tpu_custom_call.1} parent=1 // loop_footer_branch
      %17 = sbr.rel target = $region3
    $region8: #{tpu_custom_call.1} parent=1 // loop_exit
      _
    %1079 = vsyncpa [#allocation3], 1
    %s1080 = scalar_lea.sflag [#allocation3], 1
    %1081 = vsyncpa %s1080, 1
    %1082 = vsyncpa [#allocation4], 1
    %s1083 = scalar_lea.sflag [#allocation4], 1
    %1084 = vsyncpa %s1083, 1

</llo_original>
